<compile_context>
chip_gen: v5e
topology: v5e:2x2
jax: 0.10.0
libtpu: 0.0.40
codegen_flags: <defaults>
</compile_context>

<pallas_src>
import functools

import jax
import jax.numpy as jnp
from jax.experimental import pallas as pl
from jax.experimental.pallas import tpu as pltpu


def _pixel_norm_kernel(x_ref, o_ref, *, inv_c, epsilon):
    # x_ref block: (BN, C, TILE_HW). The channel reduction (axis=1) is
    # per (batch, lane) column, so batch / lane tiling is fully independent.
    x = x_ref[...]
    xf = x.astype(jnp.float32)
    mean_sq = jnp.sum(xf * xf, axis=1, keepdims=True) * inv_c   # f32 accum
    inv = jax.lax.rsqrt(mean_sq + epsilon)
    # Scale in f32, cast once on store (full-precision norm for bf16 inputs).
    o_ref[...] = (xf * inv).astype(o_ref.dtype)


def _round_up(v, m):
    return (v + m - 1) // m * m


def _per_buffer_budget_bytes():
    """Per-block VMEM byte budget, sized per TPU generation.
    v5e (16 MiB scoped default) -> ~2 MiB blocks (4 double-buffered buffers
    = 8 MiB).  v6e / v7x (32 MiB scoped default) -> ~4 MiB blocks."""
    try:
        kind = jax.devices()[0].device_kind.lower()
    except Exception:
        kind = ""
    if ("v6" in kind) or ("v7" in kind) or ("7x" in kind):
        return 4 << 20
    return 2 << 20


def _pick_tiling(n, c, hw, itemsize, per_buffer_bytes):
    """Choose (bn, tile_hw, hw_pad, c_pad): batch block, lane tile (multiple
    of 128) and padded spatial extent so one (bn, c, tile_hw) block stays
    near (but under) per_buffer_bytes, accounting for sublane padding of C."""
    # Sublane padding of the channel axis: 8 rows for 32-bit, 16 for 16-bit,
    # 32 for 8-bit dtypes.
    sub = 8 * max(1, 4 // itemsize)
    c_pad = _round_up(c, sub)
    bytes_per_lane_col = c_pad * itemsize

    hw128 = _round_up(hw, 128)
    # Largest lane tile (multiple of 128) fitting the byte budget. Floors at
    # 128 for very large C; the caller raises vmem_limit_bytes from the
    # actual block size, so the budget is never silently violated.
    max_lanes = max(128, (per_buffer_bytes // bytes_per_lane_col) // 128 * 128)

    if hw128 <= max_lanes:
        tile_hw = hw128
        hw_pad = hw128
    else:
        # Pick the tile minimizing total padded lanes (prefer larger tiles on
        # ties) so big odd maps do not pay large padding overheads.
        best = None
        t = max_lanes
        while t >= 128:
            total = _round_up(hw128, t)
            key = (total, -t)
            if best is None or key < best[0]:
                best = (key, t, total)
                if total == hw128:
                    break
            t -= 128
        tile_hw, hw_pad = best[1], best[2]

    # Block over N too when a single-image block is still far below budget
    # (small C and/or small HW): fewer grid steps, larger DMAs.
    per_image_bytes = bytes_per_lane_col * tile_hw
    bn = 1
    if per_image_bytes < per_buffer_bytes:
        max_bn = max(1, per_buffer_bytes // per_image_bytes)
        for cand in range(min(n, max_bn), 0, -1):
            if n % cand == 0:
                bn = cand
                break

    return bn, tile_hw, hw_pad, c_pad


def pixel_norm(x, epsilon=1e-8):
    """x: (N, C, H, W) array. Returns PixelNorm(x) with same shape/dtype."""
    n, c, h, w = x.shape
    hw = h * w
    itemsize = jnp.dtype(x.dtype).itemsize
    per_buffer = _per_buffer_budget_bytes()
    bn, tile_hw, hw_pad, c_pad = _pick_tiling(n, c, hw, itemsize, per_buffer)

    x3 = x.reshape(n, c, hw)
    if hw_pad != hw:
        # Zero-pad the lane axis up to a multiple of the tile; padded columns
        # normalize to 0 and are sliced off below. The channel reduction is
        # per lane column, so real columns are unaffected.
        x3 = jnp.pad(x3, ((0, 0), (0, 0), (0, hw_pad - hw)))

    grid = (n // bn, hw_pad // tile_hw)
    block_bytes = bn * c_pad * tile_hw * itemsize
    # in + out, each double-buffered, plus headroom for compiler scratch.
    # Never below the 16 MiB v5e scoped default; cap well under physical VMEM.
    vmem_limit = min(max(4 * block_bytes + (2 << 20), 16 << 20), 100 << 20)

    kernel = functools.partial(_pixel_norm_kernel, inv_c=1.0 / c, epsilon=epsilon)
    out3 = pl.pallas_call(
        kernel,
        out_shape=jax.ShapeDtypeStruct((n, c, hw_pad), x.dtype),
        grid_spec=pltpu.PrefetchScalarGridSpec(
            num_scalar_prefetch=0,
            grid=grid,
            in_specs=[pl.BlockSpec((bn, c, tile_hw), lambda i, j: (i, 0, j))],
            out_specs=pl.BlockSpec((bn, c, tile_hw), lambda i, j: (i, 0, j)),
        ),
        compiler_params=pltpu.CompilerParams(
            dimension_semantics=("parallel", "parallel"),
            vmem_limit_bytes=vmem_limit,
        ),
    )(x3)

    if hw_pad != hw:
        out3 = out3[:, :, :hw]
    return out3.reshape(n, c, h, w)


def _ref_pixel_norm(x, epsilon=1e-8):
    xf = x.astype(jnp.float32)
    return (xf / jnp.sqrt(jnp.mean(xf ** 2, axis=1, keepdims=True) + epsilon)
            ).astype(x.dtype)


if __name__ == "__main__":
    key = jax.random.PRNGKey(0)

    # Main check: small NCHW f32 input (HW = 256, multiple of 128).
    x = jax.random.normal(key, (2, 4, 16, 16), dtype=jnp.float32)
    y = jax.block_until_ready(pixel_norm(x, epsilon=1e-8))
    ref = x / jnp.sqrt(jnp.mean(x ** 2, axis=1, keepdims=True) + 1e-8)
    assert y.shape == x.shape and y.dtype == x.dtype
    assert jnp.allclose(y, ref, atol=1e-5, rtol=1e-5)

    # Odd spatial size (HW = 100) exercises the pad-to-128 + slice path.
    x_odd = jax.random.normal(jax.random.PRNGKey(1), (2, 4, 10, 10),
                              dtype=jnp.float32)
    y_odd = jax.block_until_ready(pixel_norm(x_odd, epsilon=1e-8))
    ref_odd = _ref_pixel_norm(x_odd)
    assert jnp.allclose(y_odd, ref_odd, atol=1e-5, rtol=1e-5)

    # bf16 input: normalization happens in f32 inside the kernel.
    x_bf = jax.random.normal(jax.random.PRNGKey(2), (2, 4, 16, 16),
                             dtype=jnp.bfloat16)
    y_bf = jax.block_until_ready(pixel_norm(x_bf, epsilon=1e-8))
    ref_bf = _ref_pixel_norm(x_bf)
    assert y_bf.dtype == jnp.bfloat16
    assert jnp.allclose(y_bf.astype(jnp.float32), ref_bf.astype(jnp.float32),
                        atol=2e-2, rtol=2e-2)

    print("KERNEL_OK")
</pallas_src>

<mosaic_0001>
module attributes {stable_mosaic.version = 11 : i64} {
  func.func @_pixel_norm_kernel(%arg0: i32, %arg1: i32, %arg2: memref<2x4x256xf32, #tpu.memory_space<vmem>>, %arg3: memref<2x4x256xf32, #tpu.memory_space<vmem>>) attributes {dimension_semantics = [#tpu.dimension_semantics<parallel>, #tpu.dimension_semantics<parallel>], iteration_bounds = array<i64: 1, 1>, scalar_prefetch = 0 : i64, scratch_operands = 0 : i64, tpu.core_type = #tpu.core_type<tc>, window_params = [{transform_indices = @transform_0, window_bounds = array<i64: 2, 4, 256>}, {transform_indices = @transform_1, window_bounds = array<i64: 2, 4, 256>}]} {
    %c0 = arith.constant 0 : index
    %c0_0 = arith.constant 0 : index
    %c0_1 = arith.constant 0 : index
    %0 = vector.load %arg2[%c0, %c0_0, %c0_1] : memref<2x4x256xf32, #tpu.memory_space<vmem>>, vector<2x4x256xf32>
    %1 = arith.mulf %0, %0 : vector<2x4x256xf32>
    %cst = arith.constant dense<0.000000e+00> : vector<2x256xf32>
    %2 = vector.multi_reduction <add>, %1, %cst [1] : vector<2x4x256xf32> to vector<2x256xf32>
    %3 = vector.shape_cast %2 : vector<2x256xf32> to vector<2x1x256xf32>
    %cst_2 = arith.constant 2.500000e-01 : f32
    %4 = vector.broadcast %cst_2 : f32 to vector<2x1x256xf32>
    %5 = arith.mulf %3, %4 : vector<2x1x256xf32>
    %cst_3 = arith.constant 9.99999993E-9 : f32
    %6 = vector.broadcast %cst_3 : f32 to vector<2x1x256xf32>
    %7 = arith.addf %5, %6 : vector<2x1x256xf32>
    %8 = math.rsqrt %7 : vector<2x1x256xf32>
    %9 = vector.broadcast %8 : vector<2x1x256xf32> to vector<2x4x256xf32>
    %10 = arith.mulf %0, %9 : vector<2x4x256xf32>
    %c0_4 = arith.constant 0 : index
    %c0_5 = arith.constant 0 : index
    %c0_6 = arith.constant 0 : index
    %11 = vector.load %arg3[%c0_4, %c0_5, %c0_6] : memref<2x4x256xf32, #tpu.memory_space<vmem>>, vector<2x4x256xf32>
    tpu.vector_store %arg3[%c0_4, %c0_5, %c0_6], %10 {strides = array<i32>} : memref<2x4x256xf32, #tpu.memory_space<vmem>>, vector<2x4x256xf32>,
    return
  }
  func.func @transform_0(%arg0: i32, %arg1: i32) -> (i32, i32, i32) {
    %c0_i32 = arith.constant 0 : i32
    %c0_i32_0 = arith.constant 0 : i32
    return %arg0, %c0_i32, %arg1 : i32, i32, i32
  }
  func.func @transform_1(%arg0: i32, %arg1: i32) -> (i32, i32, i32) {
    %c0_i32 = arith.constant 0 : i32
    %c0_i32_0 = arith.constant 0 : i32
    return %arg0, %c0_i32, %arg1 : i32, i32, i32
  }
}

</mosaic_0001>

<llo_original>
// kernel: tpu_custom_call.1
$region0: #{tpu_custom_call.1}
  #allocation0 [shape = 'u32[]', space=smem, size = 0x4, offset = 0x4, fixed_abs, tag = 'smem constant byte address 0x4 - core index']
  #allocation1 [shape = 'u32[72,128]{1,0:T(1,128)}', space=vmem, size = 0x9000, scoped, tag = 'internal scratch']
  %s0 = inlined_call_operand.hbm [shape: f32[2,4,256], index: 0, kind: input, shape index: {}]
  %s1 = inlined_call_operand.hbm [shape: f32[2,4,256], index: 1, kind: output, shape index: {}]
  %s2 = sld [smem:[#allocation0]]
  $region18: #{tpu_custom_call.1} parent=0
    _
  %s4 = ssub.s32 1, %s2
  %s5 = scalar_select 0, %s4, %s2
  $region1: #{tpu_custom_call.1} parent=0
    #allocation2 [shape = 'u8[8192]{0}', space=vmem, size = 0x2000, scoped, tag = 'input window, operand 0, single buffered']
    #allocation3 [shape = 's32[1]{0}', space=sflag, size = 0x4, scoped, tag = 'scoped memory for tpu_custom_call.1']
    #allocation4 [shape = 's32[1]{0}', space=sflag, size = 0x4, scoped, tag = 'scoped memory for tpu_custom_call.1']
    #allocation5 [shape = 'u8[8192]{0}', space=vmem, size = 0x2000, scoped, tag = 'output window, operand 0, single buffered']
    %6 = vsyncpa [#allocation3], 0
    %7 = vsyncpa [#allocation4], 0
    // Predicated region
    $region2: #{tpu_custom_call.1} parent=1 // pred_check
      _
    $region3: #{tpu_custom_call.1} parent=1 // pred_check_branch
      %9 = sbr.rel (0) target = $region5
    $region4: #{tpu_custom_call.1} parent=1 // pred_region
      %11 = vsyncadd [#allocation3], 0
      %s12 = sshll.u32 %s0, 4
      %s13 = int_to_ptr.hbm [resolvable:$true] %s12
      %s14 = sshll.u32 [#allocation2], 4
      %s15 = int_to_ptr.vmem [resolvable:$true] %s14
      %20 = dma.hbm_to_vmem [thread:$0]  %s13, 256, %s15, [#allocation3], 128, 128, 8
    $region5: #{tpu_custom_call.1} parent=1 // pred_fallthru
      _
    // Predicated region
    $region6: #{tpu_custom_call.1} parent=1 // pred_check
      _
    $region7: #{tpu_custom_call.1} parent=1 // pred_check_branch
      %22 = sbr.rel (0) target = $region9
    $region8: #{tpu_custom_call.1} parent=1 // pred_region
      %24 = dma.done [#allocation3], 256
    $region9: #{tpu_custom_call.1} parent=1 // pred_fallthru
      _
    %v25 = vld [vmem:[#allocation2] sm:$0xff]
    %v26 = vld [vmem:[#allocation2 + $0x8] sm:$0xff]
    %v27 = vmul.f32 %v25, %v25
    %v28 = vmul.f32 %v26, %v26
    %31 = vst [vmem:[#allocation1] ss:$2 sm:$0xff] %v27
    %v32 = vld.sshfl [vmem:[#allocation1] sm:$0xff pattern:$0x75316420]
    %v33 = vld.sshfl [vmem:[#allocation1 + $0x8] sm:$0xff pattern:$0x75316420]
    %s34 = scalar_lea.vmem [#allocation1], 16
    %35 = vst [vmem:[%s34] ss:$2 sm:$0xff] %v28
    %v36 = vld.sshfl [vmem:[#allocation1 + $0x10] sm:$0xff pattern:$0x75316420]
    %v37 = vld.sshfl [vmem:[#allocation1 + $0x18] sm:$0xff pattern:$0x75316420]
    %vm42 = vcmask 1043456
    %v43 = vsel %vm42, %v32, 0.0
    %v44 = vrot.slane %v43, 4
    %v45 = vadd.f32 %v43, %v44
    %v46 = vrot.slane %v45, 2
    %v47 = vadd.f32 %v45, %v46
    %v48 = vrot.slane %v47, 1
    %v49 = vadd.f32 %v47, %v48
    %v50 = vsel %vm42, %v33, 0.0
    %v51 = vrot.slane %v50, 4
    %v52 = vadd.f32 %v50, %v51
    %v53 = vrot.slane %v52, 2
    %v54 = vadd.f32 %v52, %v53
    %v55 = vrot.slane %v54, 1
    %v56 = vadd.f32 %v54, %v55
    %v57 = vsel %vm42, %v36, 0.0
    %v58 = vrot.slane %v57, 4
    %v59 = vadd.f32 %v57, %v58
    %v60 = vrot.slane %v59, 2
    %v61 = vadd.f32 %v59, %v60
    %v62 = vrot.slane %v61, 1
    %v63 = vadd.f32 %v61, %v62
    %v64 = vsel %vm42, %v37, 0.0
    %v65 = vrot.slane %v64, 4
    %v66 = vadd.f32 %v64, %v65
    %v67 = vrot.slane %v66, 2
    %v68 = vadd.f32 %v66, %v67
    %v69 = vrot.slane %v68, 1
    %v70 = vadd.f32 %v68, %v69
    %v71 = vmul.f32 %v49, 0.25
    %v72 = vmul.f32 %v56, 0.25
    %v73 = vmul.f32 %v63, 0.25
    %v74 = vmul.f32 %v70, 0.25
    %v75 = vadd.f32 %v71, 1e-08
    %v76 = vadd.f32 %v72, 1e-08
    %v77 = vadd.f32 %v73, 1e-08
    %v78 = vadd.f32 %v74, 1e-08
    %v79 = vrsqrt.pop %v75
    %v80 = vmul.f32 %v79, %v75
    %v81 = vmul.f32 %v80, %v79
    %v82 = vmul.f32 0.5, %v81
    %v83 = vsub.f32 1.5, %v82
    %v84 = vmul.f32 %v79, %v83
    %vm85 = vweird.f32 %v75
    %vm86 = vweird.f32 %v79
    %vm87 = vmor %vm85, %vm86
    %v88 = vsel %vm87, %v79, %v84
    %v89 = vrsqrt.pop %v76
    %v90 = vmul.f32 %v89, %v76
    %v91 = vmul.f32 %v90, %v89
    %v92 = vmul.f32 0.5, %v91
    %v93 = vsub.f32 1.5, %v92
    %v94 = vmul.f32 %v89, %v93
    %vm95 = vweird.f32 %v76
    %vm96 = vweird.f32 %v89
    %vm97 = vmor %vm95, %vm96
    %v98 = vsel %vm97, %v89, %v94
    %v99 = vrsqrt.pop %v77
    %v100 = vmul.f32 %v99, %v77
    %v101 = vmul.f32 %v100, %v99
    %v102 = vmul.f32 0.5, %v101
    %v103 = vsub.f32 1.5, %v102
    %v104 = vmul.f32 %v99, %v103
    %vm105 = vweird.f32 %v77
    %vm106 = vweird.f32 %v99
    %vm107 = vmor %vm105, %vm106
    %v108 = vsel %vm107, %v99, %v104
    %v109 = vrsqrt.pop %v78
    %v110 = vmul.f32 %v109, %v78
    %v111 = vmul.f32 %v110, %v109
    %v112 = vmul.f32 0.5, %v111
    %v113 = vsub.f32 1.5, %v112
    %v114 = vmul.f32 %v109, %v113
    %vm115 = vweird.f32 %v78
    %vm116 = vweird.f32 %v109
    %vm117 = vmor %vm115, %vm116
    %v118 = vsel %vm117, %v109, %v114
    %v123 = vrot.slane %v98, 4
    %v124 = vrot.slane %v118, 4
    %v125 = vsel %vm42, %v88, %v123
    %v126 = vsel %vm42, %v108, %v124
    %v129 = vmul.f32 %v25, %v125
    %v130 = vmul.f32 %v26, %v126
    %131 = vst [vmem:[#allocation5] sm:$0xff] %v129
    %132 = vst [vmem:[#allocation5 + $0x8] sm:$0xff] %v130
    // Predicated region
    $region10: #{tpu_custom_call.1} parent=1 // pred_check
      _
    $region11: #{tpu_custom_call.1} parent=1 // pred_check_branch
      %134 = sbr.rel (0) target = $region13
    $region12: #{tpu_custom_call.1} parent=1 // pred_region
      %136 = vsyncadd [#allocation4], 0
      %s137 = sshll.u32 [#allocation5], 4
      %s138 = int_to_ptr.vmem [resolvable:$true] %s137
      %s139 = sshll.u32 %s1, 4
      %s140 = int_to_ptr.hbm [resolvable:$true] %s139
      %145 = dma.vmem_to_hbm [thread:$0]  %s138, 256, %s140, [#allocation4], 128, 128, 8
    $region13: #{tpu_custom_call.1} parent=1 // pred_fallthru
      _
    // Predicated region
    $region14: #{tpu_custom_call.1} parent=1 // pred_check
      _
    $region15: #{tpu_custom_call.1} parent=1 // pred_check_branch
      %147 = sbr.rel (0) target = $region17
    $region16: #{tpu_custom_call.1} parent=1 // pred_region
      %149 = dma.done [#allocation4], 256
    $region17: #{tpu_custom_call.1} parent=1 // pred_fallthru
      _
    %150 = vsyncpa [#allocation3], 1
    %151 = vsyncpa [#allocation4], 1

</llo_original>
